<compile_context>
chip_gen: v7x
topology: tpu7x:2x2x1
jax: 0.10.0
libtpu: 0.0.40
codegen_flags: <defaults>
</compile_context>

<pallas_src>
import functools
import math

import jax
import jax.numpy as jnp
from jax.experimental import pallas as pl
from jax.experimental.pallas import tpu as pltpu


_INV_SQRT2 = 1.0 / math.sqrt(2.0)


def _gelu_exact(h):
    # Exact (erf) GELU — matches torch.nn.GELU() default.
    return 0.5 * h * (1.0 + jax.lax.erf(h * _INV_SQRT2))


# --------------------------- kernels ---------------------------------------


def _resident_kernel(x_ref, w1_ref, b1_ref, w2_ref, b2_ref, o_ref, *, gelu_dtype):
    # W1/W2 blocks have a constant index map -> DMA'd once for the whole call.
    h = jnp.dot(x_ref[...], w1_ref[...], preferred_element_type=jnp.float32)
    h = (h + b1_ref[...]).astype(gelu_dtype)
    h = _gelu_exact(h)
    out = jnp.dot(h.astype(w2_ref.dtype), w2_ref[...],
                  preferred_element_type=jnp.float32)
    o_ref[...] = (out + b2_ref[...]).astype(o_ref.dtype)


def _streamed_kernel_acc_scratch(x_ref, w1_ref, b1_ref, w2_ref, b2_ref, o_ref,
                                 acc_ref, *, gelu_dtype):
    # ffn (reduction) axis is the last grid axis; f32 accumulator scratch.
    k = pl.program_id(1)

    @pl.when(k == 0)
    def _init():
        acc_ref[...] = jnp.zeros_like(acc_ref)

    h = jnp.dot(x_ref[...], w1_ref[...], preferred_element_type=jnp.float32)
    h = (h + b1_ref[...]).astype(gelu_dtype)
    h = _gelu_exact(h)
    acc_ref[...] += jnp.dot(h.astype(w2_ref.dtype), w2_ref[...],
                            preferred_element_type=jnp.float32)

    @pl.when(k == pl.num_programs(1) - 1)
    def _finalize():
        # dropout: identity (eval/inference mode).
        o_ref[...] = (acc_ref[...] + b2_ref[...]).astype(o_ref.dtype)


def _streamed_kernel_acc_out(x_ref, w1_ref, b1_ref, w2_ref, b2_ref, o_ref,
                             *, gelu_dtype):
    # f32 output: accumulate straight into the VMEM-resident output block
    # (its block index is constant across k), saving the scratch buffer.
    k = pl.program_id(1)

    @pl.when(k == 0)
    def _init():
        o_ref[...] = jnp.zeros_like(o_ref)

    h = jnp.dot(x_ref[...], w1_ref[...], preferred_element_type=jnp.float32)
    h = (h + b1_ref[...]).astype(gelu_dtype)
    h = _gelu_exact(h)
    o_ref[...] += jnp.dot(h.astype(w2_ref.dtype), w2_ref[...],
                          preferred_element_type=jnp.float32)

    @pl.when(k == pl.num_programs(1) - 1)
    def _finalize():
        o_ref[...] = o_ref[...] + b2_ref[...]


# --------------------------- sizing helpers ---------------------------------


def _round_up(x, m):
    return (x + m - 1) // m * m


def _choose_row_tile(M, requested):
    """Row tile: multiple of 8; >= 2 row tiles whenever M > 8 (v7x megacore)."""
    if M <= 8:
        return 8
    tm = min(requested, _round_up(M, 8))
    two_tiles = max(8, _round_up((M + 1) // 2, 8))
    return max(8, min(tm, two_tiles))


def _pick_ffn_tile(ffn, requested):
    """Largest multiple of 128 <= requested that divides ffn (else full ffn)."""
    if ffn <= requested:
        return ffn
    t = (requested // 128) * 128
    while t >= 128:
        if ffn % t == 0:
            return t
        t -= 128
    return ffn


def _vmem_budget_bytes():
    try:
        cap = int(pltpu.get_tpu_info().vmem_capacity_bytes)
    except Exception:
        cap = 64 << 20  # conservative fallback: v7x per-TensorCore VMEM
    # Leave headroom for compiler-internal scratch (MXU staging, temps):
    # ~54 MiB on a 64 MiB chip (v7x), ~108 MiB on a 128 MiB chip (v5e/v6e).
    return min(int(cap * 0.85), 110 << 20)


# --------------------------- wrapper -----------------------------------------


def transformer_mlp(x, w1, b1, w2, b2, *, tm=512, tffn=1024,
                    mxu_dtype=jnp.bfloat16, gelu_dtype=jnp.float32,
                    weights_resident=None):
    """Fused GPT-2 MLP forward (eval-mode dropout = identity).

    x : [B, T, n_embd]; w1 : [n_embd, ffn]; b1 : [ffn]; w2 : [ffn, n_embd];
    b2 : [n_embd].  Weights are nn.Linear weights pre-transposed to
    (in_features, out_features).  Call under jax.jit and (ideally) keep the
    weights stored in `mxu_dtype` so the bf16 casts are hoisted out of the
    per-call path.  `weights_resident=None` auto-selects the VMEM-resident
    weight path when W1+W2 fit the per-generation VMEM budget.
    """
    B, T, n_embd = x.shape
    ffn = w1.shape[1]
    M = B * T
    out_dtype = x.dtype

    tm = _choose_row_tile(M, tm)
    M_pad = _round_up(M, tm)

    x2d = x.reshape(M, n_embd)
    if M_pad != M:
        x2d = jnp.pad(x2d, ((0, M_pad - M), (0, 0)))

    # Cast only when necessary (no-op when caller already stores bf16 weights).
    x2d = x2d.astype(mxu_dtype) if x2d.dtype != mxu_dtype else x2d
    w1c = w1.astype(mxu_dtype) if w1.dtype != mxu_dtype else w1
    w2c = w2.astype(mxu_dtype) if w2.dtype != mxu_dtype else w2
    b1_2d = b1.reshape(1, ffn).astype(jnp.float32)
    b2_2d = b2.reshape(1, n_embd).astype(jnp.float32)

    in_b = jnp.dtype(mxu_dtype).itemsize
    out_b = jnp.dtype(out_dtype).itemsize
    budget = _vmem_budget_bytes()
    margin = 2 << 20

    # VMEM estimate for the weights-resident path (weights conservatively
    # counted double-buffered; constant index map -> only one is ever filled).
    resident_bytes = (
        2 * tm * n_embd * in_b                       # x tile
        + 2 * 2 * n_embd * ffn * in_b                # W1 + W2
        + 2 * (ffn + n_embd) * 4                     # biases (f32)
        + 2 * tm * n_embd * out_b                    # output tile
        + tm * ffn * (4 + in_b)                      # f32 hidden + bf16 copy
        + margin
    )
    if weights_resident is None:
        weights_resident = resident_bytes <= budget

    if weights_resident:
        # ---------------- VMEM-resident weights: weights DMA'd once ---------
        grid = (M_pad // tm,)
        out2d = pl.pallas_call(
            functools.partial(_resident_kernel, gelu_dtype=gelu_dtype),
            out_shape=jax.ShapeDtypeStruct((M_pad, n_embd), out_dtype),
            grid_spec=pltpu.PrefetchScalarGridSpec(
                num_scalar_prefetch=0,
                grid=grid,
                in_specs=[
                    pl.BlockSpec((tm, n_embd), lambda i: (i, 0)),   # x row tile
                    pl.BlockSpec((n_embd, ffn), lambda i: (0, 0)),  # W1 (resident)
                    pl.BlockSpec((1, ffn), lambda i: (0, 0)),       # b1
                    pl.BlockSpec((ffn, n_embd), lambda i: (0, 0)),  # W2 (resident)
                    pl.BlockSpec((1, n_embd), lambda i: (0, 0)),    # b2
                ],
                out_specs=pl.BlockSpec((tm, n_embd), lambda i: (i, 0)),
            ),
            compiler_params=pltpu.CompilerParams(
                dimension_semantics=("parallel",),
                vmem_limit_bytes=int(min(resident_bytes, budget)),
            ),
        )(x2d, w1c, b1_2d, w2c, b2_2d)
    else:
        # ---------------- Streamed weights: 2-D grid, ffn reduction last ----
        acc_in_out = jnp.dtype(out_dtype) == jnp.dtype(jnp.float32)

        def _streamed_bytes(tk):
            return (2 * tm * n_embd * in_b            # x tile
                    + 2 * n_embd * tk * in_b          # W1 ffn slice
                    + 2 * tk * n_embd * in_b          # W2 ffn slice
                    + 2 * (tk + n_embd) * 4           # bias slices
                    + 2 * tm * n_embd * out_b         # output tile
                    + (0 if acc_in_out else tm * n_embd * 4)   # acc scratch
                    + tm * tk * (4 + in_b)            # f32 hidden + bf16 copy
                    + margin)

        tk = _pick_ffn_tile(ffn, tffn)
        while _streamed_bytes(tk) > budget and tk > 128:
            new_tk = _pick_ffn_tile(ffn, tk - 128)
            if new_tk >= tk:
                break
            tk = new_tk

        grid = (M_pad // tm, ffn // tk)
        in_specs = [
            pl.BlockSpec((tm, n_embd), lambda i, k: (i, 0)),   # x row tile
            pl.BlockSpec((n_embd, tk), lambda i, k: (0, k)),   # W1 ffn slice
            pl.BlockSpec((1, tk), lambda i, k: (0, k)),        # b1 ffn slice
            pl.BlockSpec((tk, n_embd), lambda i, k: (k, 0)),   # W2 ffn slice
            pl.BlockSpec((1, n_embd), lambda i, k: (0, 0)),    # b2
        ]
        out_spec = pl.BlockSpec((tm, n_embd), lambda i, k: (i, 0))

        if acc_in_out:
            kern = functools.partial(_streamed_kernel_acc_out,
                                     gelu_dtype=gelu_dtype)
            scratch = []
        else:
            kern = functools.partial(_streamed_kernel_acc_scratch,
                                     gelu_dtype=gelu_dtype)
            scratch = [pltpu.VMEM((tm, n_embd), jnp.float32)]

        out2d = pl.pallas_call(
            kern,
            out_shape=jax.ShapeDtypeStruct((M_pad, n_embd), out_dtype),
            grid_spec=pltpu.PrefetchScalarGridSpec(
                num_scalar_prefetch=0,
                grid=grid,
                in_specs=in_specs,
                out_specs=out_spec,
                scratch_shapes=scratch,
            ),
            compiler_params=pltpu.CompilerParams(
                dimension_semantics=("parallel", "arbitrary"),
                vmem_limit_bytes=int(min(_streamed_bytes(tk), budget)),
            ),
        )(x2d, w1c, b1_2d, w2c, b2_2d)

    if M_pad != M:
        out2d = out2d[:M]
    return out2d.reshape(B, T, n_embd)


# --------------------------- reference & test --------------------------------


def _reference_mlp(x, w1, b1, w2, b2, mxu_dtype=None):
    """Pure-JAX reference. If mxu_dtype is given, mimic the kernel's input casts."""
    if mxu_dtype is not None:
        x = x.astype(mxu_dtype)
        w1 = w1.astype(mxu_dtype)
        w2 = w2.astype(mxu_dtype)
    h = jnp.dot(x, w1, preferred_element_type=jnp.float32) + b1
    h = _gelu_exact(h)
    if mxu_dtype is not None:
        h = h.astype(mxu_dtype)
    return jnp.dot(h, w2, preferred_element_type=jnp.float32) + b2


if __name__ == "__main__":
    # Small shapes consistent with the module: batch=2, seq=8, n_embd=32, ffn=128.
    batch, seq, n_embd, ffn_hidden = 2, 8, 32, 128

    key = jax.random.PRNGKey(0)
    kx, k1, kb1, k2, kb2 = jax.random.split(key, 5)

    x = jax.random.normal(kx, (batch, seq, n_embd), dtype=jnp.float32)

    # Deterministic init (roughly matching nn.Linear's uniform bounds).
    bound1 = 1.0 / math.sqrt(n_embd)
    bound2 = 1.0 / math.sqrt(ffn_hidden)
    # Stored already transposed to (in_features, out_features).
    w1 = jax.random.uniform(k1, (n_embd, ffn_hidden), jnp.float32, -bound1, bound1)
    b1 = jax.random.uniform(kb1, (ffn_hidden,), jnp.float32, -bound1, bound1)
    w2 = jax.random.uniform(k2, (ffn_hidden, n_embd), jnp.float32, -bound2, bound2)
    b2 = jax.random.uniform(kb2, (n_embd,), jnp.float32, -bound2, bound2)

    # Pre-cast weights to bf16 once, outside the per-call path (perf feedback).
    w1_bf = w1.astype(jnp.bfloat16)
    w2_bf = w2.astype(jnp.bfloat16)

    ref_bf16 = _reference_mlp(x, w1, b1, w2, b2, mxu_dtype=jnp.bfloat16)
    ref_f32 = _reference_mlp(x, w1, b1, w2, b2)

    mlp_resident = jax.jit(functools.partial(transformer_mlp, weights_resident=True))
    mlp_streamed = jax.jit(functools.partial(transformer_mlp, weights_resident=False))

    for name, fn in (("resident", mlp_resident), ("streamed", mlp_streamed)):
        out = jax.block_until_ready(fn(x, w1_bf, b1, w2_bf, b2))
        assert out.shape == (batch, seq, n_embd), f"{name}: bad output shape"
        max_err = float(jnp.max(jnp.abs(out - ref_bf16)))
        assert max_err < 5e-3, f"{name}: mismatch vs bf16 reference ({max_err})"
        assert jnp.allclose(out, ref_f32, atol=2e-2, rtol=2e-2), \
            f"{name}: mismatch vs f32 reference"

    # Exercise the padding / multi-row-tile path (M not a multiple of the tile).
    x_odd = jax.random.normal(kx, (3, 7, n_embd), dtype=jnp.float32)
    out_odd = jax.block_until_ready(
        jax.jit(transformer_mlp)(x_odd, w1_bf, b1, w2_bf, b2))
    ref_odd = _reference_mlp(x_odd, w1, b1, w2, b2, mxu_dtype=jnp.bfloat16)
    assert out_odd.shape == (3, 7, n_embd)
    assert float(jnp.max(jnp.abs(out_odd - ref_odd))) < 5e-3, "padded-path mismatch"

    print("KERNEL_OK")
</pallas_src>

<mosaic_0001>
module attributes {stable_mosaic.version = 11 : i64} {
  func.func @_resident_kernel(%arg0: i32, %arg1: memref<8x32xbf16, #tpu.memory_space<vmem>>, %arg2: memref<32x128xbf16, #tpu.memory_space<vmem>>, %arg3: memref<1x128xf32, #tpu.memory_space<vmem>>, %arg4: memref<128x32xbf16, #tpu.memory_space<vmem>>, %arg5: memref<1x32xf32, #tpu.memory_space<vmem>>, %arg6: memref<8x32xf32, #tpu.memory_space<vmem>>) attributes {dimension_semantics = [#tpu.dimension_semantics<parallel>], iteration_bounds = array<i64: 2>, scalar_prefetch = 0 : i64, scratch_operands = 0 : i64, tpu.core_type = #tpu.core_type<tc>, window_params = [{transform_indices = @transform_0, window_bounds = array<i64: 8, 32>}, {pipeline_mode = #tpu.pipeline_mode<synchronous>, transform_indices = @transform_1, window_bounds = array<i64: 32, 128>}, {pipeline_mode = #tpu.pipeline_mode<synchronous>, transform_indices = @transform_2, window_bounds = array<i64: 1, 128>}, {pipeline_mode = #tpu.pipeline_mode<synchronous>, transform_indices = @transform_3, window_bounds = array<i64: 128, 32>}, {pipeline_mode = #tpu.pipeline_mode<synchronous>, transform_indices = @transform_4, window_bounds = array<i64: 1, 32>}, {transform_indices = @transform_5, window_bounds = array<i64: 8, 32>}]} {
    %c0 = arith.constant 0 : index
    %c0_0 = arith.constant 0 : index
    %0 = vector.load %arg1[%c0, %c0_0] : memref<8x32xbf16, #tpu.memory_space<vmem>>, vector<8x32xbf16>
    %c0_1 = arith.constant 0 : index
    %c0_2 = arith.constant 0 : index
    %1 = vector.load %arg2[%c0_1, %c0_2] : memref<32x128xbf16, #tpu.memory_space<vmem>>, vector<32x128xbf16>
    %cst = arith.constant dense<0.000000e+00> : vector<8x128xf32>
    %2 = tpu.matmul %0, %1, %cst {dimension_numbers = #tpu.dot_dimension_numbers<[1], [0], [0], [1], [0, 0, 1, 1], [], []>} : vector<8x32xbf16>, vector<32x128xbf16>, vector<8x128xf32> -> vector<8x128xf32>
    %c0_3 = arith.constant 0 : index
    %c0_4 = arith.constant 0 : index
    %3 = vector.load %arg3[%c0_3, %c0_4] : memref<1x128xf32, #tpu.memory_space<vmem>>, vector<1x128xf32>
    %4 = vector.broadcast %3 : vector<1x128xf32> to vector<8x128xf32>
    %5 = arith.addf %2, %4 : vector<8x128xf32>
    %cst_5 = arith.constant 5.000000e-01 : f32
    %6 = vector.broadcast %cst_5 : f32 to vector<8x128xf32>
    %7 = arith.mulf %6, %5 : vector<8x128xf32>
    %cst_6 = arith.constant 0.707106769 : f32
    %8 = vector.broadcast %cst_6 : f32 to vector<8x128xf32>
    %9 = arith.mulf %5, %8 : vector<8x128xf32>
    %10 = math.erf %9 : vector<8x128xf32>
    %cst_7 = arith.constant 1.000000e+00 : f32
    %11 = vector.broadcast %cst_7 : f32 to vector<8x128xf32>
    %12 = arith.addf %11, %10 : vector<8x128xf32>
    %13 = arith.mulf %7, %12 : vector<8x128xf32>
    %14 = arith.truncf %13 : vector<8x128xf32> to vector<8x128xbf16>
    %c0_8 = arith.constant 0 : index
    %c0_9 = arith.constant 0 : index
    %15 = vector.load %arg4[%c0_8, %c0_9] : memref<128x32xbf16, #tpu.memory_space<vmem>>, vector<128x32xbf16>
    %cst_10 = arith.constant dense<0.000000e+00> : vector<8x32xf32>
    %16 = tpu.matmul %14, %15, %cst_10 {dimension_numbers = #tpu.dot_dimension_numbers<[1], [0], [0], [1], [0, 0, 1, 1], [], []>} : vector<8x128xbf16>, vector<128x32xbf16>, vector<8x32xf32> -> vector<8x32xf32>
    %c0_11 = arith.constant 0 : index
    %c0_12 = arith.constant 0 : index
    %17 = vector.load %arg5[%c0_11, %c0_12] : memref<1x32xf32, #tpu.memory_space<vmem>>, vector<1x32xf32>
    %18 = vector.broadcast %17 : vector<1x32xf32> to vector<8x32xf32>
    %19 = arith.addf %16, %18 : vector<8x32xf32>
    %c0_13 = arith.constant 0 : index
    %c0_14 = arith.constant 0 : index
    %20 = vector.load %arg6[%c0_13, %c0_14] : memref<8x32xf32, #tpu.memory_space<vmem>>, vector<8x32xf32>
    tpu.vector_store %arg6[%c0_13, %c0_14], %19 {strides = array<i32>} : memref<8x32xf32, #tpu.memory_space<vmem>>, vector<8x32xf32>,
    return
  }
  func.func @transform_0(%arg0: i32) -> (i32, i32) {
    %c0_i32 = arith.constant 0 : i32
    %c0_i32_0 = arith.constant 0 : i32
    return %arg0, %c0_i32 : i32, i32
  }
  func.func @transform_1(%arg0: i32) -> (i32, i32) {
    %c0_i32 = arith.constant 0 : i32
    %c0_i32_0 = arith.constant 0 : i32
    %c0_i32_1 = arith.constant 0 : i32
    return %c0_i32, %c0_i32_0 : i32, i32
  }
  func.func @transform_2(%arg0: i32) -> (i32, i32) {
    %c0_i32 = arith.constant 0 : i32
    %c0_i32_0 = arith.constant 0 : i32
    %c0_i32_1 = arith.constant 0 : i32
    return %c0_i32, %c0_i32_0 : i32, i32
  }
  func.func @transform_3(%arg0: i32) -> (i32, i32) {
    %c0_i32 = arith.constant 0 : i32
    %c0_i32_0 = arith.constant 0 : i32
    %c0_i32_1 = arith.constant 0 : i32
    return %c0_i32, %c0_i32_0 : i32, i32
  }
  func.func @transform_4(%arg0: i32) -> (i32, i32) {
    %c0_i32 = arith.constant 0 : i32
    %c0_i32_0 = arith.constant 0 : i32
    %c0_i32_1 = arith.constant 0 : i32
    return %c0_i32, %c0_i32_0 : i32, i32
  }
  func.func @transform_5(%arg0: i32) -> (i32, i32) {
    %c0_i32 = arith.constant 0 : i32
    %c0_i32_0 = arith.constant 0 : i32
    return %arg0, %c0_i32 : i32, i32
  }
}

</mosaic_0001>

<llo_original>
// kernel: transformer_mlp.1
$region0: #{transformer_mlp.1}
  #allocation0 [shape = 'u32[]', space=smem, size = 0x4, offset = 0x4, fixed_abs, tag = 'smem constant byte address 0x4 - core index']
  #allocation1 [shape = 'u32[144,128]{1,0:T(1,128)}', space=vmem, size = 0x12000, scoped, tag = 'internal scratch']
  %s0 = inlined_call_operand.vmem [shape: bf16[16,32], index: 0, kind: input, shape index: {}]
  %s1 = inlined_call_operand.vmem [shape: bf16[32,128], index: 1, kind: input, shape index: {}]
  %s2 = inlined_call_operand.vmem [shape: f32[1,128], index: 2, kind: input, shape index: {}]
  %s3 = inlined_call_operand.vmem [shape: bf16[128,32], index: 3, kind: input, shape index: {}]
  %s4 = inlined_call_operand.vmem [shape: f32[1,32], index: 4, kind: input, shape index: {}]
  %s5 = inlined_call_operand.hbm [shape: f32[16,32], index: 5, kind: output, shape index: {}]
  %s6 = sld [smem:[#allocation0]]
  $region53: #{transformer_mlp.1} parent=0
    _
  %s8 = ssub.s32 1, %s6
  %s9 = scalar_select 0, %s8, %s6
  $region1: #{transformer_mlp.1} parent=0
    #allocation2 [shape = 'u8[8192]{0}', space=vmem, size = 0x2000, scoped, tag = 'output window, operand 0']
    #allocation3 [shape = 's32[2]{0}', space=sflag, size = 0x8, scoped, tag = 'scoped memory for transformer_mlp.1']
    %10 = vsyncpa [#allocation3], 0
    %s11 = scalar_lea.sflag [#allocation3], 1
    %12 = vsyncpa %s11, 0
    loop: start=0, step=1, limit=4
    $region2: #{transformer_mlp.1} parent=1 // loop_pre_header
      _
    $region3: #{transformer_mlp.1} parent=1 // loop_header
      %s14 = sphi 0, %s18
      %p15 = scmp.ge.s32.totalorder %s14, 4
      %s24 = sphi 0, %s26
      %s27 = sphi 0, %s24
      %s28 = sphi 0, %s27
      %s44 = sphi 0, %s28
      %s48 = sphi 0, %s48
      %s50 = sphi 0, %s48
      %s51 = sphi 0, %s50
      %s65 = sphi 0, %s51
      %s69 = sphi 0, %s69
      %s71 = sphi 0, %s69
      %s72 = sphi 0, %s71
      %s86 = sphi 0, %s72
      %s90 = sphi 0, %s90
      %s92 = sphi 0, %s90
      %s93 = sphi 0, %s92
      %s107 = sphi 0, %s93
      %s111 = sphi 0, %s111
      %s113 = sphi 0, %s111
      %s114 = sphi 0, %s113
      %s128 = sphi 0, %s114
      %s134 = sphi 0, %s136
      %s137 = sphi 0, %s134
      %s138 = sphi 0, %s137
      %s154 = sphi 0, %s138
    $region4: #{transformer_mlp.1} parent=1 // loop_header_branch
      %17 = sbr.rel (%p15) target = $region8
    $region5: #{transformer_mlp.1} parent=1 // loop_body
      %s19 = ssub.s32 %s14, 1
      %s20 = ssub.s32 %s14, 2
      %s21 = sadd.s32 %s14, 1
      %s22 = ssub.s32 %s14, %s21
      %p23 = scmp.eq.s32.totalorder %s22, 0
      %s25 = sadd.s32 %s24, 1
      %s26 = scalar_select %p23, %s24, %s25
      %p29 = pneg %p23
      %p30 = scmp.eq.s32.totalorder %s14, 1
      %p31 = por %p29, %p30
      %p32 = scmp.ne.s32.totalorder %s24, %s27
      %p33 = scmp.eq.s32.totalorder %s14, 0
      %p34 = por %p32, %p33
      %p35 = scmp.ne.s32.totalorder %s24, %s27
      %p36 = scmp.eq.s32.totalorder %s19, 1
      %p37 = por %p35, %p36
      %p38 = scmp.ne.s32.totalorder %s27, %s28
      %p39 = scmp.eq.s32.totalorder %s19, 0
      %p40 = por %p38, %p39
      %p41 = scmp.ne.s32.totalorder %s27, %s28
      %p42 = scmp.eq.s32.totalorder %s20, 1
      %p43 = por %p41, %p42
      %p45 = scmp.ne.s32.totalorder %s28, %s44
      %p46 = scmp.eq.s32.totalorder %s20, 0
      %p47 = por %p45, %p46
      %s49 = sadd.s32 %s48, 1
      %p52 = scmp.eq.s32.totalorder %s14, 1
      %p53 = scmp.ne.s32.totalorder %s48, %s50
      %p54 = scmp.eq.s32.totalorder %s14, 0
      %p55 = por %p53, %p54
      %p56 = scmp.ne.s32.totalorder %s48, %s50
      %p57 = scmp.eq.s32.totalorder %s19, 1
      %p58 = por %p56, %p57
      %p59 = scmp.ne.s32.totalorder %s50, %s51
      %p60 = scmp.eq.s32.totalorder %s19, 0
      %p61 = por %p59, %p60
      %p62 = scmp.ne.s32.totalorder %s50, %s51
      %p63 = scmp.eq.s32.totalorder %s20, 1
      %p64 = por %p62, %p63
      %p66 = scmp.ne.s32.totalorder %s51, %s65
      %p67 = scmp.eq.s32.totalorder %s20, 0
      %p68 = por %p66, %p67
      %s70 = sadd.s32 %s69, 1
      %p73 = scmp.eq.s32.totalorder %s14, 1
      %p74 = scmp.ne.s32.totalorder %s69, %s71
      %p75 = scmp.eq.s32.totalorder %s14, 0
      %p76 = por %p74, %p75
      %p77 = scmp.ne.s32.totalorder %s69, %s71
      %p78 = scmp.eq.s32.totalorder %s19, 1
      %p79 = por %p77, %p78
      %p80 = scmp.ne.s32.totalorder %s71, %s72
      %p81 = scmp.eq.s32.totalorder %s19, 0
      %p82 = por %p80, %p81
      %p83 = scmp.ne.s32.totalorder %s71, %s72
      %p84 = scmp.eq.s32.totalorder %s20, 1
      %p85 = por %p83, %p84
      %p87 = scmp.ne.s32.totalorder %s72, %s86
      %p88 = scmp.eq.s32.totalorder %s20, 0
      %p89 = por %p87, %p88
      %s91 = sadd.s32 %s90, 1
      %p94 = scmp.eq.s32.totalorder %s14, 1
      %p95 = scmp.ne.s32.totalorder %s90, %s92
      %p96 = scmp.eq.s32.totalorder %s14, 0
      %p97 = por %p95, %p96
      %p98 = scmp.ne.s32.totalorder %s90, %s92
      %p99 = scmp.eq.s32.totalorder %s19, 1
      %p100 = por %p98, %p99
      %p101 = scmp.ne.s32.totalorder %s92, %s93
      %p102 = scmp.eq.s32.totalorder %s19, 0
      %p103 = por %p101, %p102
      %p104 = scmp.ne.s32.totalorder %s92, %s93
      %p105 = scmp.eq.s32.totalorder %s20, 1
      %p106 = por %p104, %p105
      %p108 = scmp.ne.s32.totalorder %s93, %s107
      %p109 = scmp.eq.s32.totalorder %s20, 0
      %p110 = por %p108, %p109
      %s112 = sadd.s32 %s111, 1
      %p115 = scmp.eq.s32.totalorder %s14, 1
      %p116 = scmp.ne.s32.totalorder %s111, %s113
      %p117 = scmp.eq.s32.totalorder %s14, 0
      %p118 = por %p116, %p117
      %p119 = scmp.ne.s32.totalorder %s111, %s113
      %p120 = scmp.eq.s32.totalorder %s19, 1
      %p121 = por %p119, %p120
      %p122 = scmp.ne.s32.totalorder %s113, %s114
      %p123 = scmp.eq.s32.totalorder %s19, 0
      %p124 = por %p122, %p123
      %p125 = scmp.ne.s32.totalorder %s113, %s114
      %p126 = scmp.eq.s32.totalorder %s20, 1
      %p127 = por %p125, %p126
      %p129 = scmp.ne.s32.totalorder %s114, %s128
      %p130 = scmp.eq.s32.totalorder %s20, 0
      %p131 = por %p129, %p130
      %s132 = ssub.s32 %s14, %s21
      %p133 = scmp.eq.s32.totalorder %s132, 0
      %s135 = sadd.s32 %s134, 1
      %s136 = scalar_select %p133, %s134, %s135
      %p139 = pneg %p133
      %p140 = scmp.eq.s32.totalorder %s14, 1
      %p141 = por %p139, %p140
      %p142 = scmp.ne.s32.totalorder %s134, %s137
      %p143 = scmp.eq.s32.totalorder %s14, 0
      %p144 = por %p142, %p143
      %p145 = scmp.ne.s32.totalorder %s134, %s137
      %p146 = scmp.eq.s32.totalorder %s19, 1
      %p147 = por %p145, %p146
      %p148 = scmp.ne.s32.totalorder %s137, %s138
      %p149 = scmp.eq.s32.totalorder %s19, 0
      %p150 = por %p148, %p149
      %p151 = scmp.ne.s32.totalorder %s137, %s138
      %p152 = scmp.eq.s32.totalorder %s20, 1
      %p153 = por %p151, %p152
      %p155 = scmp.ne.s32.totalorder %s138, %s154
      %p156 = scmp.eq.s32.totalorder %s20, 0
      %p157 = por %p155, %p156
      %p158 = scmp.le.s32.totalorder 1, %s14
      %p159 = scmp.lt.s32.totalorder %s14, 3
      %p160 = pnand %p158, %p159
      %p161 = pneg %p160
      // Predicated region
      $region9: #{transformer_mlp.1} parent=5 // pred_check
        _
      $region10: #{transformer_mlp.1} parent=5 // pred_check_branch
        %163 = sbr.rel (%p160) target = $region12
      $region11: #{transformer_mlp.1} parent=5 // pred_region
        %s164 = ssub.s32 %s14, 1
        // Predicated region
        $region13: #{transformer_mlp.1} parent=11 // pred_check
          %p165 = pneg %p61
        $region14: #{transformer_mlp.1} parent=11 // pred_check_branch
          %167 = sbr.rel (%p165) target = $region16
        $region15: #{transformer_mlp.1} parent=11 // pred_region
          _
        $region16: #{transformer_mlp.1} parent=11 // pred_fallthru
          _
        // Predicated region
        $region17: #{transformer_mlp.1} parent=11 // pred_check
          %p168 = pneg %p82
        $region18: #{transformer_mlp.1} parent=11 // pred_check_branch
          %170 = sbr.rel (%p168) target = $region20
        $region19: #{transformer_mlp.1} parent=11 // pred_region
          _
        $region20: #{transformer_mlp.1} parent=11 // pred_fallthru
          _
        // Predicated region
        $region21: #{transformer_mlp.1} parent=11 // pred_check
          %p171 = pneg %p103
        $region22: #{transformer_mlp.1} parent=11 // pred_check_branch
          %173 = sbr.rel (%p171) target = $region24
        $region23: #{transformer_mlp.1} parent=11 // pred_region
          _
        $region24: #{transformer_mlp.1} parent=11 // pred_fallthru
          _
        // Predicated region
        $region25: #{transformer_mlp.1} parent=11 // pred_check
          %p174 = pneg %p124
        $region26: #{transformer_mlp.1} parent=11 // pred_check_branch
          %176 = sbr.rel (%p174) target = $region28
        $region27: #{transformer_mlp.1} parent=11 // pred_region
          _
        $region28: #{transformer_mlp.1} parent=11 // pred_fallthru
          _
      $region12: #{transformer_mlp.1} parent=5 // pred_fallthru
        _
      %p177 = scmp.lt.s32.totalorder %s14, 2
      // Predicated region
      $region29: #{transformer_mlp.1} parent=5 // pred_check
        %p178 = pneg %p177
      $region30: #{transformer_mlp.1} parent=5 // pred_check_branch
        %180 = sbr.rel (%p178) target = $region32
      $region31: #{transformer_mlp.1} parent=5 // pred_region
        // Predicated region
        $region33: #{transformer_mlp.1} parent=31 // pred_check
          %p181 = pneg %p34
        $region34: #{transformer_mlp.1} parent=31 // pred_check_branch
          %183 = sbr.rel (%p181) target = $region36
        $region35: #{transformer_mlp.1} parent=31 // pred_region
          %p184 = scmp.lt.s32.totalorder %s14, 1
          %s185 = scalar_select %p184, %s14, 1
          %s186 = smul.addr %s185, 4
          %s187 = scalar_lea.vmem %s0, %s186
        $region36: #{transformer_mlp.1} parent=31 // pred_fallthru
          _
      $region32: #{transformer_mlp.1} parent=5 // pred_fallthru
        _
      %p188 = scmp.le.s32.totalorder 1, %s14
      %p189 = scmp.lt.s32.totalorder %s14, 3
      %p190 = pnand %p188, %p189
      %p191 = pneg %p190
      // Predicated region
      $region37: #{transformer_mlp.1} parent=5 // pred_check
        _
      $region38: #{transformer_mlp.1} parent=5 // pred_check_branch
        %193 = sbr.rel (%p190) target = $region40
      $region39: #{transformer_mlp.1} parent=5 // pred_region
        %s194 = ssub.s32 %s14, 1
        %p195 = scmp.lt.s32.totalorder %s19, 1
        %s196 = scalar_select %p195, %s19, 1
        %s197 = smul.addr %s196, 4
        %s198 = scalar_lea.vmem %s0, %s197
        %p199 = pneg %p40
        %p200 = pneg %p37
        %p201 = pneg %p61
        %p202 = pneg %p58
        %p203 = pneg %p82
        %p204 = pneg %p79
        %p205 = pneg %p103
        %p206 = pneg %p100
        %p207 = pneg %p124
        %p208 = pneg %p121
        %p209 = pneg %p150
        %p210 = pneg %p147
        %s211 = sand.u32 %s137, 1
        %s212 = scalar_lea.sflag [#allocation3], %s211
        %s213 = sand.u32 %s137, 1
        %s214 = smul.addr %s213, 8
        %s215 = scalar_lea.vmem [#allocation2], %s214
        %p216 = scmp.lt.s32.totalorder %s19, 1
        %s217 = scalar_select %p216, %s19, 1
        %s218 = smul.addr %s217, 4
        %s219 = scalar_lea.vmem %s0, %s218
        %v221 = vld [vmem:[%s219] sm:$0xf]
        %v222 = vld [vmem:[%s1] sm:$0xf]
        %v223 = vld [vmem:[%s1 + $0x4] sm:$0xf]
        %v224 = vld [vmem:[%s1 + $0x8] sm:$0xf]
        %v225 = vld [vmem:[%s1 + $0xc] sm:$0xf]
        %v226 = vld [vmem:[%s2] sm:$0x1]
        %v228 = vlaneseq
        %v229 = vshrl.u32 %v228, 7
        %v230 = vsub.s32 0, %v229
        %v231 = vrot.slane %v226, %v230
        %v237 = vunpack.c.l.b16 %v222
        %v238 = vunpack.c.l.b16 %v223
        %v239 = vunpack.c.l.b16 %v224
        %v240 = vunpack.c.l.b16 %v225
        %v241 = vpack.c.b16 %v238, %v237
        %v242 = vpack.c.b16 %v240, %v239
        %vm245 = vcmask 261120
        %v247 = vsel %vm245, %v221, 0
        %249 = vmatprep.subr.bf16.mxu0 0
        %250 = vmatpush1.bf16.msra.mxu0 %v241
        %251 = vmatprep.subr.bf16.mxu0 0
        %252 = vmatpush1.bf16.msra.mxu0 %v242
        %253 = vmatprep.subr.bf16.mxu0 0
        %254 = vmatpush1.bf16.msra.mxu0 0
        %255 = vmatprep.subr.bf16.mxu0 0
        %256 = vmatpush1.bf16.msra.mxu0 0
        %257 = vmatprep.subr.bf16.mxu0 0
        %258 = vmatpush1.bf16.msra.mxu0 0
        %259 = vmatprep.subr.bf16.mxu0 0
        %260 = vmatpush1.bf16.msra.mxu0 0
        %261 = vmatprep.subr.bf16.mxu0 0
        %262 = vmatpush1.bf16.msra.mxu0 0
        %263 = vmatprep.subr.bf16.mxu0 0
        %264 = vmatpush1.bf16.msra.mxu0 0
        %265 = vmatprep.subr.bf16.mxu0 0
        %266 = vmatpush1.bf16.msra.mxu0 0
        %267 = vmatprep.subr.bf16.mxu0 0
        %268 = vmatpush1.bf16.msra.mxu0 0
        %269 = vmatprep.subr.bf16.mxu0 0
        %270 = vmatpush1.bf16.msra.mxu0 0
        %271 = vmatprep.subr.bf16.mxu0 0
        %272 = vmatpush1.bf16.msra.mxu0 0
        %273 = vmatprep.subr.bf16.mxu0 0
        %274 = vmatpush1.bf16.msra.mxu0 0
        %275 = vmatprep.subr.bf16.mxu0 0
        %276 = vmatpush1.bf16.msra.mxu0 0
        %277 = vmatprep.subr.bf16.mxu0 0
        %278 = vmatpush1.bf16.msra.mxu0 0
        %279 = vmatprep.subr.bf16.mxu0 0
        %280 = vmatpush1.bf16.msra.mxu0 0
        %281 = vmatprep.mubr.bf16.mxu0 0
        %282 = vmatmul.mubr.bf16.gmra.mrb[0].mxu0 %v247
        %v283 = vpop.f32.mrb[0].mxu0
        %v284 = vadd.f32 %v231, %v283
        %v285 = vpop.f32.mrb[0].mxu0
        %v286 = vpop.f32.mrb[0].mxu0
        %v287 = vpop.f32.mrb[0].mxu0
        %288 = vdwg.mxu0
        %v289 = vmul.f32 %v284, 0.5
        %v290 = vmul.f32 %v284, 0.70710677
        %v291 = verf.f32.pop %v290
        %v292 = vadd.f32 %v291, 1.0
        %v293 = vmul.f32 %v289, %v292
        %v294 = vpack.c.bf16 %v293, %v293
        %v295 = vld [vmem:[%s3] sm:$0xf]
        %v296 = vld [vmem:[%s3 + $0x4] sm:$0xf]
        %v297 = vld [vmem:[%s3 + $0x8] sm:$0xf]
        %v298 = vld [vmem:[%s3 + $0xc] sm:$0xf]
        %v299 = vld [vmem:[%s3 + $0x10] sm:$0xf]
        %v300 = vld [vmem:[%s3 + $0x14] sm:$0xf]
        %v301 = vld [vmem:[%s3 + $0x18] sm:$0xf]
        %v302 = vld [vmem:[%s3 + $0x1c] sm:$0xf]
        %v303 = vld [vmem:[%s3 + $0x20] sm:$0xf]
        %v304 = vld [vmem:[%s3 + $0x24] sm:$0xf]
        %v305 = vld [vmem:[%s3 + $0x28] sm:$0xf]
        %v306 = vld [vmem:[%s3 + $0x2c] sm:$0xf]
        %v307 = vld [vmem:[%s3 + $0x30] sm:$0xf]
        %v308 = vld [vmem:[%s3 + $0x34] sm:$0xf]
        %v309 = vld [vmem:[%s3 + $0x38] sm:$0xf]
        %v310 = vld [vmem:[%s3 + $0x3c] sm:$0xf]
        %v311 = vld [vmem:[%s4] sm:$0x1]
        %v313 = vlaneseq
        %v314 = vshrl.u32 %v313, 7
        %v315 = vsub.s32 0, %v314
        %v316 = vrot.slane %v311, %v315
        %v334 = vunpack.c.l.b16 %v295
        %v335 = vunpack.c.l.b16 %v296
        %v336 = vunpack.c.l.b16 %v297
        %v337 = vunpack.c.l.b16 %v298
        %v338 = vunpack.c.l.b16 %v299
        %v339 = vunpack.c.l.b16 %v300
        %v340 = vunpack.c.l.b16 %v301
        %v341 = vunpack.c.l.b16 %v302
        %v342 = vunpack.c.l.b16 %v303
        %v343 = vunpack.c.l.b16 %v304
        %v344 = vunpack.c.l.b16 %v305
        %v345 = vunpack.c.l.b16 %v306
        %v346 = vunpack.c.l.b16 %v307
        %v347 = vunpack.c.l.b16 %v308
        %v348 = vunpack.c.l.b16 %v309
        %v349 = vunpack.c.l.b16 %v310
        %v350 = vpack.c.b16 %v335, %v334
        %v351 = vpack.c.b16 %v337, %v336
        %v352 = vpack.c.b16 %v339, %v338
        %v353 = vpack.c.b16 %v341, %v340
        %v354 = vpack.c.b16 %v343, %v342
        %v355 = vpack.c.b16 %v345, %v344
        %v356 = vpack.c.b16 %v347, %v346
        %v357 = vpack.c.b16 %v349, %v348
        %366 = vmatprep.subr.bf16.mxu0 0
        %367 = vmatpush1.bf16.msra.mxu0 %v350
        %368 = vmatprep.subr.bf16.mxu0 0
        %369 = vmatpush1.bf16.msra.mxu0 %v351
        %370 = vmatprep.subr.bf16.mxu0 0
        %371 = vmatpush1.bf16.msra.mxu0 %v352
        %372 = vmatprep.subr.bf16.mxu0 0
        %373 = vmatpush1.bf16.msra.mxu0 %v353
        %374 = vmatprep.subr.bf16.mxu0 0
        %375 = vmatpush1.bf16.msra.mxu0 %v354
        %376 = vmatprep.subr.bf16.mxu0 0
        %377 = vmatpush1.bf16.msra.mxu0 %v355
        %378 = vmatprep.subr.bf16.mxu0 0
        %379 = vmatpush1.bf16.msra.mxu0 %v356
        %380 = vmatprep.subr.bf16.mxu0 0
        %381 = vmatpush1.bf16.msra.mxu0 %v357
        %382 = vmatprep.subr.bf16.mxu0 0
        %383 = vmatpush1.bf16.msra.mxu0 0
        %384 = vmatprep.subr.bf16.mxu0 0
        %385 = vmatpush1.bf16.msra.mxu0 0
        %386 = vmatprep.subr.bf16.mxu0 0
        %387 = vmatpush1.bf16.msra.mxu0 0
        %388 = vmatprep.subr.bf16.mxu0 0
        %389 = vmatpush1.bf16.msra.mxu0 0
        %390 = vmatprep.subr.bf16.mxu0 0
        %391 = vmatpush1.bf16.msra.mxu0 0
        %392 = vmatprep.subr.bf16.mxu0 0
        %393 = vmatpush1.bf16.msra.mxu0 0
        %394 = vmatprep.subr.bf16.mxu0 0
        %395 = vmatpush1.bf16.msra.mxu0 0
        %396 = vmatprep.subr.bf16.mxu0 0
        %397 = vmatpush1.bf16.msra.mxu0 0
        %398 = vmatprep.mubr.bf16.mxu0 0
        %399 = vmatmul.mubr.bf16.gmra.mrb[0].mxu0 %v294
        %v400 = vpop.f32.mrb[0].mxu0
        %v401 = vadd.f32 %v316, %v400
        %v402 = vpop.f32.mrb[0].mxu0
        %v403 = vpop.f32.mrb[0].mxu0
        %v404 = vpop.f32.mrb[0].mxu0
        %405 = vdwg.mxu0
        %406 = vst.msk [vmem:[%s215] sm:$0xff] %vm245, %v401
        %s407 = sand.u32 %s137, 1
        %s408 = scalar_lea.sflag [#allocation3], %s407
        %s409 = sand.u32 %s137, 1
        %s410 = smul.addr %s409, 8
        %s411 = scalar_lea.vmem [#allocation2], %s410
        // Predicated region
        $region41: #{transformer_mlp.1} parent=39 // pred_check
          %p412 = pneg %p147
        $region42: #{transformer_mlp.1} parent=39 // pred_check_branch
          %414 = sbr.rel (%p412) target = $region44
        $region43: #{transformer_mlp.1} parent=39 // pred_region
          %s416 = ssub.s32 128, 128
          %417 = vsyncadd %s408, %s416
          %s418 = smul.addr %s19, 128
          %s419 = scalar_lea.hbm %s5, %s418
          %s421 = sshll.u32 %s411, 4
          %s422 = int_to_ptr.vmem [resolvable:$true] %s421
          %424 = dma.vmem_to_hbm [thread:$0]  %s422, 128, %s419, %s408
        $region44: #{transformer_mlp.1} parent=39 // pred_fallthru
          _
      $region40: #{transformer_mlp.1} parent=5 // pred_fallthru
        _
      %p425 = scmp.le.s32.totalorder 2, %s14
      // Predicated region
      $region45: #{transformer_mlp.1} parent=5 // pred_check
        %p426 = pneg %p425
      $region46: #{transformer_mlp.1} parent=5 // pred_check_branch
        %428 = sbr.rel (%p426) target = $region48
      $region47: #{transformer_mlp.1} parent=5 // pred_region
        %s429 = ssub.s32 %s14, 2
        // Predicated region
        $region49: #{transformer_mlp.1} parent=47 // pred_check
          %p430 = pneg %p153
        $region50: #{transformer_mlp.1} parent=47 // pred_check_branch
          %432 = sbr.rel (%p430) target = $region52
        $region51: #{transformer_mlp.1} parent=47 // pred_region
          %s433 = sand.u32 %s138, 1
          %s434 = scalar_lea.sflag [#allocation3], %s433
          %s435 = sand.u32 %s138, 1
          %s436 = smul.addr %s435, 8
          %s437 = scalar_lea.vmem [#allocation2], %s436
          %438 = dma.done %s434, 128
        $region52: #{transformer_mlp.1} parent=47 // pred_fallthru
          _
      $region48: #{transformer_mlp.1} parent=5 // pred_fallthru
        _
    $region6: #{transformer_mlp.1} parent=1 // loop_footer
      %s18 = sadd.s32 1, %s14
    $region7: #{transformer_mlp.1} parent=1 // loop_footer_branch
      %13 = sbr.rel target = $region3
    $region8: #{transformer_mlp.1} parent=1 // loop_exit
      _
    %439 = vsyncpa [#allocation3], 1
    %s440 = scalar_lea.sflag [#allocation3], 1
    %441 = vsyncpa %s440, 1

</llo_original>
